<compile_context>
chip_gen: v5e
topology: v5e:2x2
jax: 0.10.0
libtpu: 0.0.40
codegen_flags: <defaults>
</compile_context>

<pallas_src>
import functools
import math
from dataclasses import dataclass

import jax
import jax.numpy as jnp
from jax.experimental import pallas as pl
from jax.experimental.pallas import tpu as pltpu

COMPUTE_DTYPE = jnp.bfloat16
_VMEM_LIMIT = 48 * 1024 * 1024   # fits v7x's 64 MiB physical VMEM with headroom


@dataclass
class ModelArgs:
    dim: int = 512
    n_layers: int = 8
    n_heads: int = 8
    vocab_size: int = -1
    multiple_of: int = 256
    norm_eps: float = 1e-05
    max_batch_size: int = 32
    max_seq_len: int = 2048


# ------------------------------ tiling helper ------------------------------

def _pick_tile(dim, pref, align):
    """Largest tile <= pref that is a multiple of `align` and divides `dim`.
    If no such divisor exists, return the aligned preferred tile; callers use
    a cdiv grid so the trailing partial block is padded/masked by Pallas
    (never the full dimension -> no giant VMEM-busting weight blocks)."""
    if dim <= pref:
        return dim
    t = (pref // align) * align
    while t >= align:
        if dim % t == 0:
            return t
        t -= align
    return (pref // align) * align


# --------------------- fused RMSNorm + matmul (QKV / logits) ---------------------

def _norm_matmul_kernel(x_ref, g_ref, w_ref, o_ref, xn_ref, *, eps):
    # Normalize the row tile once (at the first column tile) into VMEM scratch.
    @pl.when(pl.program_id(1) == 0)
    def _():
        x = x_ref[...].astype(jnp.float32)
        ms = jnp.mean(x * x, axis=-1, keepdims=True)
        xn_ref[...] = ((x * jax.lax.rsqrt(ms + eps)) *
                       g_ref[...].astype(jnp.float32)).astype(xn_ref.dtype)
    o_ref[...] = jnp.dot(xn_ref[...], w_ref[...],
                         preferred_element_type=jnp.float32).astype(o_ref.dtype)


def fused_norm_matmul(x, gamma, w, eps, out_dtype):
    """out = RMSNorm(x; gamma) @ w.  x: (M, D), w: (D, N)."""
    M, D = x.shape
    N = w.shape[1]
    tm = _pick_tile(M, 256, 8)
    tn = _pick_tile(N, 512, 128)
    return pl.pallas_call(
        functools.partial(_norm_matmul_kernel, eps=eps),
        grid=(pl.cdiv(M, tm), pl.cdiv(N, tn)),
        in_specs=[pl.BlockSpec((tm, D), lambda i, j: (i, 0)),
                  pl.BlockSpec((1, D), lambda i, j: (0, 0)),
                  pl.BlockSpec((D, tn), lambda i, j: (0, j))],
        out_specs=pl.BlockSpec((tm, tn), lambda i, j: (i, j)),
        out_shape=jax.ShapeDtypeStruct((M, N), out_dtype),
        scratch_shapes=[pltpu.VMEM((tm, D), COMPUTE_DTYPE)],
        compiler_params=pltpu.CompilerParams(
            dimension_semantics=("parallel", "arbitrary"),
            vmem_limit_bytes=_VMEM_LIMIT),
    )(x, gamma.reshape(1, D), w)


# --- fused (attn out-proj + residual) + RMSNorm + SwiGLU FFN + residual ---

def _attn_out_ffn_kernel(attn_ref, x_ref, wo_ref, g_ref, w1_ref, w3_ref, w2_ref,
                         o_ref, *, eps):
    # x_new = x + attn @ wo      (attention out-projection + residual, f32)
    x_new = x_ref[...].astype(jnp.float32) + jnp.dot(
        attn_ref[...], wo_ref[...], preferred_element_type=jnp.float32)
    # RMSNorm(x_new)
    ms = jnp.mean(x_new * x_new, axis=-1, keepdims=True)
    xn = ((x_new * jax.lax.rsqrt(ms + eps)) *
          g_ref[...].astype(jnp.float32)).astype(w1_ref.dtype)
    # SwiGLU FFN
    h1 = jnp.dot(xn, w1_ref[...], preferred_element_type=jnp.float32)
    h3 = jnp.dot(xn, w3_ref[...], preferred_element_type=jnp.float32)
    sig = pl.reciprocal(1.0 + jnp.exp(-h1), approx=True)   # EUP rcp, idle slot
    h = (h1 * sig) * h3
    y = jnp.dot(h.astype(w2_ref.dtype), w2_ref[...],
                preferred_element_type=jnp.float32)
    o_ref[...] = (x_new + y).astype(o_ref.dtype)


def fused_attn_out_ffn(attn, x, wo, gamma, w1, w3, w2, eps):
    """out = x_new + w2(silu(x_n@w1) * (x_n@w3)),
       x_new = x + attn@wo,  x_n = RMSNorm(x_new; gamma)."""
    M, D = x.shape
    Hd = w1.shape[1]
    tm = _pick_tile(M, 256, 8)
    return pl.pallas_call(
        functools.partial(_attn_out_ffn_kernel, eps=eps),
        grid=(pl.cdiv(M, tm),),
        in_specs=[pl.BlockSpec((tm, D), lambda i: (i, 0)),
                  pl.BlockSpec((tm, D), lambda i: (i, 0)),
                  pl.BlockSpec((D, D), lambda i: (0, 0)),
                  pl.BlockSpec((1, D), lambda i: (0, 0)),
                  pl.BlockSpec((D, Hd), lambda i: (0, 0)),
                  pl.BlockSpec((D, Hd), lambda i: (0, 0)),
                  pl.BlockSpec((Hd, D), lambda i: (0, 0))],
        out_specs=pl.BlockSpec((tm, D), lambda i: (i, 0)),
        out_shape=jax.ShapeDtypeStruct((M, D), x.dtype),
        compiler_params=pltpu.CompilerParams(
            dimension_semantics=("parallel",),
            vmem_limit_bytes=_VMEM_LIMIT),
    )(attn, x, wo, gamma.reshape(1, D), w1, w3, w2)


# ----------------------- flash attention (online softmax) -----------------------

def _flash_kernel(q_ref, k_ref, v_ref, cq_ref, sq_ref, ck_ref, sk_ref,
                  o_ref, q_sc, m_sc, l_sc, acc_sc, *, causal, scale):
    tq, H, hd = q_ref.shape          # q block:  (tq, H, hd)  (native layout)
    tk = k_ref.shape[0]              # kv block: (tk, H, hd)
    qi = pl.program_id(1)
    ki = pl.program_id(2)

    @pl.when(ki == 0)
    def _init():
        m_sc[...] = jnp.full(m_sc.shape, -1e30, jnp.float32)
        l_sc[...] = jnp.zeros(l_sc.shape, jnp.float32)
        acc_sc[...] = jnp.zeros(acc_sc.shape, jnp.float32)
        # RoPE + scale on q once per (b, q-tile); store head-major for the MXU.
        q = q_ref[...].astype(jnp.float32)                       # (tq, H, hd)
        cos = cq_ref[...][:, None, :]                            # (tq, 1, hd)
        sin = sq_ref[...][:, None, :]                            # sign-folded
        q = (q * cos + pltpu.roll(q, hd // 2, axis=2) * sin) * scale
        q_sc[...] = jnp.transpose(q, (1, 0, 2)).astype(q_sc.dtype)   # (H,tq,hd)

    def _block():
        # RoPE on the k tile (cheap vs. the exp work), head-major relayout.
        k = k_ref[...].astype(jnp.float32)                       # (tk, H, hd)
        cos = ck_ref[...][:, None, :]
        sin = sk_ref[...][:, None, :]
        k = k * cos + pltpu.roll(k, hd // 2, axis=2) * sin
        k_t = jnp.transpose(k, (1, 0, 2)).astype(v_ref.dtype)    # (H, tk, hd)
        v_t = jnp.transpose(v_ref[...], (1, 0, 2))               # (H, tk, hd)

        s = jnp.einsum('hqd,hkd->hqk', q_sc[...], k_t,
                       preferred_element_type=jnp.float32)       # (H, tq, tk)
        if causal:
            row = qi * tq + jax.lax.broadcasted_iota(jnp.int32, (tq, 1), 0)
            col = ki * tk + jax.lax.broadcasted_iota(jnp.int32, (1, tk), 1)
            s = jnp.where((col <= row)[None, :, :], s, -1e30)

        m_prev = m_sc[...]
        m_new = jnp.maximum(m_prev, jnp.max(s, axis=-1, keepdims=True))
        alpha = jnp.exp(m_prev - m_new)
        # bf16 exp: the EUP is the saturating unit of this loop on v6e/v7x;
        # the running sum / accumulator stay in f32.
        p = jnp.exp((s - m_new).astype(jnp.bfloat16))
        l_sc[...] = alpha * l_sc[...] + jnp.sum(p.astype(jnp.float32),
                                                axis=-1, keepdims=True)
        acc_sc[...] = alpha * acc_sc[...] + jnp.einsum(
            'hqk,hkd->hqd', p, v_t, preferred_element_type=jnp.float32)
        m_sc[...] = m_new

    if causal:
        # Fully-masked kv tiles: compute skipped here, DMA skipped by the
        # clamped kv index_map (block index unchanged -> no re-fetch).
        pl.when(ki * tk < (qi + 1) * tq)(_block)
    else:
        _block()

    @pl.when(ki == pl.num_programs(2) - 1)
    def _finalize():
        inv = pl.reciprocal(l_sc[...], approx=True)
        o = acc_sc[...] * inv                                    # (H, tq, hd)
        # Lane-dense (tq, H*hd) store straight into the (B, S, D) output.
        o_ref[...] = jnp.transpose(o, (1, 0, 2)).reshape(tq, H * hd).astype(
            o_ref.dtype)


def flash_attention(qkv, cos, sin, is_causal):
    """qkv: (B, S, 3, H, hd) bf16; cos/sin: (S, hd) f32 (sin sign-folded).
    Returns attention output (B, S, H*hd) in qkv.dtype."""
    B, S, three, H, hd = qkv.shape
    assert three == 3
    scale = 1.0 / math.sqrt(hd)
    tq = _pick_tile(S, 256, 8)
    tk = _pick_tile(S, 256, 8)
    # TODO(synk): pad S to a tile multiple for sequence lengths with no small divisor.
    assert S % tq == 0 and S % tk == 0, "flash kernel expects S divisible by its tiles"
    nq, nk = S // tq, S // tk

    if is_causal:
        def kv_idx(i, j):
            return jnp.minimum(j, ((i + 1) * tq - 1) // tk)
    else:
        def kv_idx(i, j):
            return j

    q_spec = pl.BlockSpec((None, tq, None, H, hd), lambda b, i, j: (b, i, 0, 0, 0))
    k_spec = pl.BlockSpec((None, tk, None, H, hd),
                          lambda b, i, j: (b, kv_idx(i, j), 1, 0, 0))
    v_spec = pl.BlockSpec((None, tk, None, H, hd),
                          lambda b, i, j: (b, kv_idx(i, j), 2, 0, 0))
    cq_spec = pl.BlockSpec((tq, hd), lambda b, i, j: (i, 0))
    sq_spec = pl.BlockSpec((tq, hd), lambda b, i, j: (i, 0))
    ck_spec = pl.BlockSpec((tk, hd), lambda b, i, j: (kv_idx(i, j), 0))
    sk_spec = pl.BlockSpec((tk, hd), lambda b, i, j: (kv_idx(i, j), 0))
    o_spec = pl.BlockSpec((None, tq, H * hd), lambda b, i, j: (b, i, 0))

    return pl.pallas_call(
        functools.partial(_flash_kernel, causal=is_causal, scale=scale),
        grid=(B, nq, nk),
        in_specs=[q_spec, k_spec, v_spec, cq_spec, sq_spec, ck_spec, sk_spec],
        out_specs=o_spec,
        out_shape=jax.ShapeDtypeStruct((B, S, H * hd), qkv.dtype),
        scratch_shapes=[pltpu.VMEM((H, tq, hd), qkv.dtype),    # roped q (head-major)
                        pltpu.VMEM((H, tq, 1), jnp.float32),   # running max
                        pltpu.VMEM((H, tq, 1), jnp.float32),   # running denom
                        pltpu.VMEM((H, tq, hd), jnp.float32)], # accumulator
        compiler_params=pltpu.CompilerParams(
            dimension_semantics=("parallel", "parallel", "arbitrary"),
            vmem_limit_bytes=_VMEM_LIMIT),
    )(qkv, qkv, qkv, cos, sin, cos, sin)


# ------------------------------ plain-JAX glue ------------------------------

def rotary_tables(S, hd):
    """cos / sign-folded sin so the kernel only needs one pltpu.roll:
       rope(x) = x*cos + roll(x, hd//2)*sin_signed."""
    inv_freq = 1.0 / (10000.0 ** (jnp.arange(0, hd, 2, dtype=jnp.float32) / hd))
    t = jnp.arange(S, dtype=jnp.float32)
    freqs = jnp.outer(t, inv_freq)                   # (S, hd//2)
    emb = jnp.concatenate([freqs, freqs], axis=-1)   # (S, hd)
    cos = jnp.cos(emb)
    sin = jnp.sin(emb)
    sin_signed = jnp.concatenate([-sin[:, :hd // 2], sin[:, hd // 2:]], axis=-1)
    return cos, sin_signed


def _linear(key, fan_in, fan_out, dtype=COMPUTE_DTYPE):
    bound = 1.0 / math.sqrt(fan_in)
    w = jax.random.uniform(key, (fan_in, fan_out), jnp.float32, -bound, bound)
    return w.astype(dtype)


def init_params(key, args: ModelArgs):
    D = args.dim
    hidden = int(2 * (4 * D) / 3)
    hidden = args.multiple_of * ((hidden + args.multiple_of - 1) // args.multiple_of)
    k_emb, k_out, *k_layers = jax.random.split(key, 2 + args.n_layers)
    params = {
        "emb": (0.02 * jax.random.normal(k_emb, (args.vocab_size, D),
                                         jnp.float32)).astype(COMPUTE_DTYPE),
        "out": _linear(k_out, D, args.vocab_size),
        "final_norm": jnp.ones((D,), jnp.float32),
        "layers": [],
    }
    for kl in k_layers:
        k1, k2, k3, k4, k5 = jax.random.split(kl, 5)
        params["layers"].append({
            "attn_norm": jnp.ones((D,), jnp.float32),
            "ffn_norm": jnp.ones((D,), jnp.float32),
            "wqkv": _linear(k1, D, 3 * D),
            "wo": _linear(k2, D, D),
            "w1": _linear(k3, D, hidden),
            "w3": _linear(k4, D, hidden),
            "w2": _linear(k5, hidden, D),
        })
    return params


def transformer_forward(tokens, params, args: ModelArgs, is_causal=True):
    B, S = tokens.shape
    D, H = args.dim, args.n_heads
    hd = D // H
    M = B * S
    cos, sin = rotary_tables(S, hd)                 # hoisted out of the layer loop
    # token embedding lookup (gather) stays in plain JAX
    x = params["emb"][tokens].reshape(M, D)         # (B*S, D) bf16
    for lp in params["layers"]:
        # ---- attention: qkv projection (norm fused), flash attn (rope fused) ----
        qkv = fused_norm_matmul(x, lp["attn_norm"], lp["wqkv"], args.norm_eps,
                                out_dtype=COMPUTE_DTYPE)
        qkv = qkv.reshape(B, S, 3, H, hd)           # metadata-only reshape
        attn = flash_attention(qkv, cos, sin, is_causal)        # (B, S, D) bf16
        # ---- out-proj + residual + RMSNorm + SwiGLU FFN + residual (one kernel) ----
        x = fused_attn_out_ffn(attn.reshape(M, D), x, lp["wo"], lp["ffn_norm"],
                               lp["w1"], lp["w3"], lp["w2"], args.norm_eps)
    # final RMSNorm fused into the vocab projection; logits emitted in f32
    logits = fused_norm_matmul(x, params["final_norm"], params["out"],
                               args.norm_eps, out_dtype=jnp.float32)
    return logits.reshape(B, S, args.vocab_size)


if __name__ == "__main__":
    args = ModelArgs(dim=64, n_layers=2, n_heads=4, vocab_size=128,
                     multiple_of=64, norm_eps=1e-5,
                     max_batch_size=2, max_seq_len=8)
    key = jax.random.PRNGKey(0)
    k_tok, k_par = jax.random.split(key)
    tokens = jax.random.randint(k_tok, (2, 8), 0, args.vocab_size, dtype=jnp.int32)
    params = init_params(k_par, args)

    logits = transformer_forward(tokens, params, args, is_causal=True)
    jax.block_until_ready(logits)

    assert logits.shape == (2, 8, args.vocab_size)
    assert logits.dtype == jnp.float32
    assert bool(jnp.all(jnp.isfinite(logits)))
    print("KERNEL_OK")
</pallas_src>

<mosaic_0001>
module attributes {stable_mosaic.version = 11 : i64} {
  func.func @_norm_matmul_kernel(%arg0: i32, %arg1: i32, %arg2: memref<16x64xbf16, #tpu.memory_space<vmem>>, %arg3: memref<1x64xf32, #tpu.memory_space<vmem>>, %arg4: memref<64x192xbf16, #tpu.memory_space<vmem>>, %arg5: memref<16x192xbf16, #tpu.memory_space<vmem>>, %arg6: memref<16x64xbf16, #tpu.memory_space<vmem>>) attributes {dimension_semantics = [#tpu.dimension_semantics<parallel>, #tpu.dimension_semantics<arbitrary>], iteration_bounds = array<i64: 1, 1>, scalar_prefetch = 0 : i64, scratch_operands = 1 : i64, tpu.core_type = #tpu.core_type<tc>, window_params = [{transform_indices = @transform_0, window_bounds = array<i64: 16, 64>}, {pipeline_mode = #tpu.pipeline_mode<synchronous>, transform_indices = @transform_1, window_bounds = array<i64: 1, 64>}, {transform_indices = @transform_2, window_bounds = array<i64: 64, 192>}, {transform_indices = @transform_3, window_bounds = array<i64: 16, 192>}]} {
    %c0_i32 = arith.constant 0 : i32
    %0 = arith.cmpi eq, %arg1, %c0_i32 : i32
    %1 = arith.extui %0 : i1 to i32
    %c0_i32_0 = arith.constant 0 : i32
    %2 = arith.cmpi ne, %1, %c0_i32_0 : i32
    scf.if %2 {
      %c0_6 = arith.constant 0 : index
      %c0_7 = arith.constant 0 : index
      %8 = vector.load %arg2[%c0_6, %c0_7] : memref<16x64xbf16, #tpu.memory_space<vmem>>, vector<16x64xbf16>
      %9 = arith.extf %8 : vector<16x64xbf16> to vector<16x64xf32>
      %10 = arith.mulf %9, %9 : vector<16x64xf32>
      %cst_8 = arith.constant dense<0.000000e+00> : vector<16xf32>
      %11 = vector.multi_reduction <add>, %10, %cst_8 [1] : vector<16x64xf32> to vector<16xf32>
      %12 = vector.shape_cast %11 : vector<16xf32> to vector<16x1xf32>
      %cst_9 = arith.constant 6.400000e+01 : f32
      %13 = vector.broadcast %cst_9 : f32 to vector<16x1xf32>
      %14 = arith.divf %12, %13 : vector<16x1xf32>
      %cst_10 = arith.constant 9.99999974E-6 : f32
      %15 = vector.broadcast %cst_10 : f32 to vector<16x1xf32>
      %16 = arith.addf %14, %15 : vector<16x1xf32>
      %17 = math.rsqrt %16 : vector<16x1xf32>
      %18 = vector.broadcast %17 : vector<16x1xf32> to vector<16x64xf32>
      %19 = arith.mulf %9, %18 : vector<16x64xf32>
      %c0_11 = arith.constant 0 : index
      %c0_12 = arith.constant 0 : index
      %20 = vector.load %arg3[%c0_11, %c0_12] : memref<1x64xf32, #tpu.memory_space<vmem>>, vector<1x64xf32>
      %21 = vector.broadcast %20 : vector<1x64xf32> to vector<16x64xf32>
      %22 = arith.mulf %19, %21 : vector<16x64xf32>
      %23 = arith.truncf %22 : vector<16x64xf32> to vector<16x64xbf16>
      %c0_13 = arith.constant 0 : index
      %c0_14 = arith.constant 0 : index
      %24 = vector.load %arg6[%c0_13, %c0_14] : memref<16x64xbf16, #tpu.memory_space<vmem>>, vector<16x64xbf16>
      tpu.vector_store %arg6[%c0_13, %c0_14], %23 {strides = array<i32>} : memref<16x64xbf16, #tpu.memory_space<vmem>>, vector<16x64xbf16>,
    } else {
    }
    %c0 = arith.constant 0 : index
    %c0_1 = arith.constant 0 : index
    %3 = vector.load %arg6[%c0, %c0_1] : memref<16x64xbf16, #tpu.memory_space<vmem>>, vector<16x64xbf16>
    %c0_2 = arith.constant 0 : index
    %c0_3 = arith.constant 0 : index
    %4 = vector.load %arg4[%c0_2, %c0_3] : memref<64x192xbf16, #tpu.memory_space<vmem>>, vector<64x192xbf16>
    %cst = arith.constant dense<0.000000e+00> : vector<16x192xf32>
    %5 = tpu.matmul %3, %4, %cst {dimension_numbers = #tpu.dot_dimension_numbers<[1], [0], [0], [1], [0, 0, 1, 1], [], []>} : vector<16x64xbf16>, vector<64x192xbf16>, vector<16x192xf32> -> vector<16x192xf32>
    %6 = arith.truncf %5 : vector<16x192xf32> to vector<16x192xbf16>
    %c0_4 = arith.constant 0 : index
    %c0_5 = arith.constant 0 : index
    %7 = vector.load %arg5[%c0_4, %c0_5] : memref<16x192xbf16, #tpu.memory_space<vmem>>, vector<16x192xbf16>
    tpu.vector_store %arg5[%c0_4, %c0_5], %6 {strides = array<i32>} : memref<16x192xbf16, #tpu.memory_space<vmem>>, vector<16x192xbf16>,
    return
  }
  func.func @transform_0(%arg0: i32, %arg1: i32) -> (i32, i32) {
    %c0_i32 = arith.constant 0 : i32
    %c0_i32_0 = arith.constant 0 : i32
    return %arg0, %c0_i32 : i32, i32
  }
  func.func @transform_1(%arg0: i32, %arg1: i32) -> (i32, i32) {
    %c0_i32 = arith.constant 0 : i32
    %c0_i32_0 = arith.constant 0 : i32
    %c0_i32_1 = arith.constant 0 : i32
    return %c0_i32, %c0_i32_0 : i32, i32
  }
  func.func @transform_2(%arg0: i32, %arg1: i32) -> (i32, i32) {
    %c0_i32 = arith.constant 0 : i32
    %c0_i32_0 = arith.constant 0 : i32
    return %c0_i32, %arg1 : i32, i32
  }
  func.func @transform_3(%arg0: i32, %arg1: i32) -> (i32, i32) {
    %c0_i32 = arith.constant 0 : i32
    return %arg0, %arg1 : i32, i32
  }
}

</mosaic_0001>

<llo_original>
// kernel: tpu_custom_call.1
$region0: #{tpu_custom_call.1}
  #allocation0 [shape = 'u32[]', space=smem, size = 0x4, offset = 0x4, fixed_abs, tag = 'smem constant byte address 0x4 - core index']
  #allocation1 [shape = 'u32[72,128]{1,0:T(1,128)}', space=vmem, size = 0x9000, scoped, tag = 'internal scratch']
  #allocation2 [shape = 'bf16[16,64]{1,0:T(8,128)(2,1)}', space=vmem, size = 0x1000, scoped, tag = 'scratch operand']
  %s0 = inlined_call_operand.hbm [shape: bf16[16,64], index: 0, kind: input, shape index: {}]
  %s1 = inlined_call_operand.hbm [shape: f32[1,64], index: 1, kind: input, shape index: {}]
  %s2 = inlined_call_operand.hbm [shape: bf16[64,192], index: 2, kind: input, shape index: {}]
  %s3 = inlined_call_operand.hbm [shape: bf16[16,192], index: 3, kind: output, shape index: {}]
  %s4 = sld [smem:[#allocation0]]
  $region38: #{tpu_custom_call.1} parent=0
    _
  %s6 = ssub.s32 1, %s4
  %s7 = scalar_select 0, %s6, %s4
  $region1: #{tpu_custom_call.1} parent=0
    #allocation3 [shape = 'u8[4096]{0}', space=vmem, size = 0x1000, scoped, tag = 'input window, operand 0, single buffered']
    #allocation4 [shape = 's32[1]{0}', space=sflag, size = 0x4, scoped, tag = 'scoped memory for tpu_custom_call.1']
    #allocation5 [shape = 's32[1]{0}', space=sflag, size = 0x4, scoped, tag = 'scoped memory for tpu_custom_call.1']
    #allocation6 [shape = 'u8[512]{0}', space=vmem, size = 0x400, scoped, tag = 'input window, operand 1, single buffered']
    #allocation7 [shape = 's32[1]{0}', space=sflag, size = 0x4, scoped, tag = 'scoped memory for tpu_custom_call.1']
    #allocation8 [shape = 'u8[32768]{0}', space=vmem, size = 0x8000, scoped, tag = 'input window, operand 2, single buffered']
    #allocation9 [shape = 'u8[8192]{0}', space=vmem, size = 0x2000, scoped, tag = 'output window, operand 0, single buffered']
    %8 = vsyncpa [#allocation4], 0
    %9 = vsyncpa [#allocation7], 0
    %10 = vsyncpa [#allocation5], 0
    // Predicated region
    $region2: #{tpu_custom_call.1} parent=1 // pred_check
      _
    $region3: #{tpu_custom_call.1} parent=1 // pred_check_branch
      %12 = sbr.rel (0) target = $region5
    $region4: #{tpu_custom_call.1} parent=1 // pred_region
      %14 = vsyncadd [#allocation4], 0
      %s15 = sshll.u32 %s0, 4
      %s16 = int_to_ptr.hbm [resolvable:$true] %s15
      %s17 = sshll.u32 [#allocation3], 4
      %s18 = int_to_ptr.vmem [resolvable:$true] %s17
      %23 = dma.hbm_to_vmem [thread:$0]  %s16, 128, %s18, [#allocation4], 64, 64, 4
    $region5: #{tpu_custom_call.1} parent=1 // pred_fallthru
      _
    // Predicated region
    $region6: #{tpu_custom_call.1} parent=1 // pred_check
      _
    $region7: #{tpu_custom_call.1} parent=1 // pred_check_branch
      %25 = sbr.rel (0) target = $region9
    $region8: #{tpu_custom_call.1} parent=1 // pred_region
      %27 = vsyncadd [#allocation7], 0
      %s29 = sshll.u32 %s1, 4
      %s30 = int_to_ptr.hbm [resolvable:$true] %s29
      %s31 = sshll.u32 [#allocation6], 4
      %s32 = int_to_ptr.vmem [resolvable:$true] %s31
      %34 = dma.hbm_to_vmem [thread:$0]  %s30, 16, %s32, [#allocation7]
    $region9: #{tpu_custom_call.1} parent=1 // pred_fallthru
      _
    // Predicated region
    $region10: #{tpu_custom_call.1} parent=1 // pred_check
      _
    $region11: #{tpu_custom_call.1} parent=1 // pred_check_branch
      %36 = sbr.rel (0) target = $region13
    $region12: #{tpu_custom_call.1} parent=1 // pred_region
      %38 = vsyncadd [#allocation7], 0
      %s39 = sshll.u32 %s2, 4
      %s40 = int_to_ptr.hbm [resolvable:$true] %s39
      %s41 = sshll.u32 [#allocation8], 4
      %s42 = int_to_ptr.vmem [resolvable:$true] %s41
      %47 = dma.hbm_to_vmem [thread:$0]  %s40, 1024, %s42, [#allocation7], 128, 128, 8
    $region13: #{tpu_custom_call.1} parent=1 // pred_fallthru
      _
    // Predicated region
    $region14: #{tpu_custom_call.1} parent=1 // pred_check
      _
    $region15: #{tpu_custom_call.1} parent=1 // pred_check_branch
      %49 = sbr.rel (0) target = $region17
    $region16: #{tpu_custom_call.1} parent=1 // pred_region
      %51 = dma.done [#allocation4], 128
    $region17: #{tpu_custom_call.1} parent=1 // pred_fallthru
      _
    // Predicated region
    $region18: #{tpu_custom_call.1} parent=1 // pred_check
      _
    $region19: #{tpu_custom_call.1} parent=1 // pred_check_branch
      %53 = sbr.rel (0) target = $region21
    $region20: #{tpu_custom_call.1} parent=1 // pred_region
      %55 = dma.done [#allocation7], 16
    $region21: #{tpu_custom_call.1} parent=1 // pred_fallthru
      _
    // Predicated region
    $region22: #{tpu_custom_call.1} parent=1 // pred_check
      _
    $region23: #{tpu_custom_call.1} parent=1 // pred_check_branch
      %57 = sbr.rel (0) target = $region25
    $region24: #{tpu_custom_call.1} parent=1 // pred_region
      %59 = dma.done [#allocation7], 1024
    $region25: #{tpu_custom_call.1} parent=1 // pred_fallthru
      _
    %p61 = scmp.eq.s32.totalorder 0, 0
    // Predicated region
    $region26: #{tpu_custom_call.1} parent=1 // pred_check
      %p62 = pneg %p61
    $region27: #{tpu_custom_call.1} parent=1 // pred_check_branch
      %64 = sbr.rel (%p62) target = $region29
    $region28: #{tpu_custom_call.1} parent=1 // pred_region
      %v65 = vld [vmem:[#allocation3] sm:$0xf]
      %v66 = vld [vmem:[#allocation3 + $0x4] sm:$0xf]
      %v67 = vunpack.c.l.bf16 %v65
      %v68 = vunpack.c.l.bf16 %v66
      %v69 = vmul.f32 %v67, %v67
      %v70 = vmul.f32 %v68, %v68
      %vm71 = vcmask 523264
      %v72 = vsel %vm71, %v69, 0.0
      %73 = vadd.xlane.f32.xlu0 %v72
      %v74 = vpop.xlane.xlu0 %73
      %v75 = vsel %vm71, %v70, 0.0
      %76 = vadd.xlane.f32.xlu0 %v75
      %v77 = vpop.xlane.xlu0 %76
      %v78 = vrcp.pop 64.0
      %v79 = vmul.f32 64.0, %v78
      %v80 = vsub.f32 1.0, %v79
      %v81 = vmul.f32 %v78, %v80
      %v82 = vadd.f32 %v78, %v81
      %vm83 = vweird.f32 %v78
      %v84 = vsel %vm83, %v78, %v82
      %v85 = vmul.f32 %v74, %v84
      %v86 = vmul.f32 %v77, %v84
      %v87 = vadd.f32 %v85, 1e-05
      %v88 = vadd.f32 %v86, 1e-05
      %v89 = vrsqrt.pop %v87
      %v90 = vmul.f32 %v89, %v87
      %v91 = vmul.f32 %v90, %v89
      %v92 = vmul.f32 0.5, %v91
      %v93 = vsub.f32 1.5, %v92
      %v94 = vmul.f32 %v89, %v93
      %vm95 = vweird.f32 %v87
      %vm96 = vweird.f32 %v89
      %vm97 = vmor %vm95, %vm96
      %v98 = vsel %vm97, %v89, %v94
      %v99 = vrsqrt.pop %v88
      %v100 = vmul.f32 %v99, %v88
      %v101 = vmul.f32 %v100, %v99
      %v102 = vmul.f32 0.5, %v101
      %v103 = vsub.f32 1.5, %v102
      %v104 = vmul.f32 %v99, %v103
      %vm105 = vweird.f32 %v88
      %vm106 = vweird.f32 %v99
      %vm107 = vmor %vm105, %vm106
      %v108 = vsel %vm107, %v99, %v104
      %v109 = vmul.f32 %v67, %v98
      %v110 = vmul.f32 %v68, %v108
      %v111 = vld [vmem:[#allocation6] sm:$0x1]
      %v113 = vperm.slane %v111, 0
      %v115 = vmul.f32 %v109, %v113
      %v116 = vmul.f32 %v110, %v113
      %v117 = vpack.c.bf16 %v115, %v115
      %v118 = vpack.c.bf16 %v116, %v116
      %vm119 = vcmask 519168
      %120 = vst.msk [vmem:[#allocation2] sm:$0xf] %vm119, %v117
      %121 = vst.msk [vmem:[#allocation2 + $0x4] sm:$0xf] %vm119, %v118
    $region29: #{tpu_custom_call.1} parent=1 // pred_fallthru
      _
    %v122 = vld [vmem:[#allocation2] sm:$0xf]
    %v123 = vld [vmem:[#allocation2 + $0x4] sm:$0xf]
    %v124 = vld [vmem:[#allocation8] sm:$0xff]
    %v125 = vld [vmem:[#allocation8 + $0x8] sm:$0xff]
    %v126 = vld [vmem:[#allocation8 + $0x10] sm:$0xff]
    %v127 = vld [vmem:[#allocation8 + $0x18] sm:$0xff]
    %v128 = vld [vmem:[#allocation8 + $0x20] sm:$0xff]
    %v129 = vld [vmem:[#allocation8 + $0x28] sm:$0xff]
    %v130 = vld [vmem:[#allocation8 + $0x30] sm:$0xff]
    %v131 = vld [vmem:[#allocation8 + $0x38] sm:$0xff]
    %v134 = vunpack.c.l.b16 %v122
    %v135 = vunpack.c.l.b16 %v123
    %v136 = vpack.c.b16 %v135, %v134
    %v145 = vunpack.c.l.b16 %v124
    %v146 = vunpack.c.h.b16 %v124
    %v147 = vunpack.c.l.b16 %v125
    %v148 = vunpack.c.h.b16 %v125
    %v149 = vunpack.c.l.b16 %v126
    %v150 = vunpack.c.h.b16 %v126
    %v151 = vunpack.c.l.b16 %v127
    %v152 = vunpack.c.h.b16 %v127
    %v153 = vunpack.c.l.b16 %v128
    %v154 = vunpack.c.h.b16 %v128
    %v155 = vunpack.c.l.b16 %v129
    %v156 = vunpack.c.h.b16 %v129
    %v157 = vunpack.c.l.b16 %v130
    %v158 = vunpack.c.h.b16 %v130
    %v159 = vunpack.c.l.b16 %v131
    %v160 = vunpack.c.h.b16 %v131
    %v161 = vpack.c.b16 %v147, %v145
    %v162 = vpack.c.b16 %v148, %v146
    %v163 = vpack.c.b16 %v151, %v149
    %v164 = vpack.c.b16 %v152, %v150
    %v165 = vpack.c.b16 %v155, %v153
    %v166 = vpack.c.b16 %v156, %v154
    %v167 = vpack.c.b16 %v159, %v157
    %v168 = vpack.c.b16 %v160, %v158
    %vm177 = vcmask 523264
    %v179 = vsel %vm177, %v136, 0
    %181 = vmatpush.bf16.msra.mxu0 0
    %182 = vmatpush.bf16.msra.mxu0 0
    %183 = vmatpush.bf16.msra.mxu0 0
    %184 = vmatpush.bf16.msra.mxu0 0
    %185 = vmatpush.bf16.msra.mxu0 %v167
    %186 = vmatpush.bf16.msra.mxu0 %v165
    %187 = vmatpush.bf16.msra.mxu0 %v163
    %188 = vmatpush.bf16.msra.mxu0 %v161
    %189 = vmatmul.bf16.gmra.mxu0 %v179
    %v190 = vpop.f32.mrf.mxu0
    %v191 = vadd.f32 0.0, %v190
    %v192 = vpop.f32.mrf.mxu0
    %v193 = vadd.f32 0.0, %v192
    %194 = vdwg.mxu0
    %195 = vmatpush.bf16.msra.mxu0 0
    %196 = vmatpush.bf16.msra.mxu0 0
    %197 = vmatpush.bf16.msra.mxu0 0
    %198 = vmatpush.bf16.msra.mxu0 0
    %199 = vmatpush.bf16.msra.mxu0 %v168
    %200 = vmatpush.bf16.msra.mxu0 %v166
    %201 = vmatpush.bf16.msra.mxu0 %v164
    %202 = vmatpush.bf16.msra.mxu0 %v162
    %203 = vmatmul.bf16.gmra.mxu0 %v179
    %v204 = vpop.f32.mrf.mxu0
    %v205 = vadd.f32 0.0, %v204
    %v206 = vpop.f32.mrf.mxu0
    %v207 = vadd.f32 0.0, %v206
    %208 = vdwg.mxu0
    %v209 = vpack.c.bf16 %v205, %v191
    %v210 = vpack.c.bf16 %v207, %v193
    %vm211 = vcmask 1043456
    %vm212 = vcmask 523268
    %vm213 = vmor %vm212, %vm211
    %214 = vst.msk [vmem:[#allocation9] sm:$0xff] %vm213, %v209
    %215 = vst.msk [vmem:[#allocation9 + $0x8] sm:$0xff] %vm213, %v210
    // Predicated region
    $region30: #{tpu_custom_call.1} parent=1 // pred_check
      _
    $region31: #{tpu_custom_call.1} parent=1 // pred_check_branch
      %217 = sbr.rel (0) target = $region33
    $region32: #{tpu_custom_call.1} parent=1 // pred_region
      %219 = vsyncadd [#allocation5], 0
      %s220 = sshll.u32 [#allocation9], 4
      %s221 = int_to_ptr.vmem [resolvable:$true] %s220
      %s222 = sshll.u32 %s3, 4
      %s223 = int_to_ptr.hbm [resolvable:$true] %s222
      %228 = dma.vmem_to_hbm [thread:$0]  %s221, 256, %s223, [#allocation5], 128, 128, 8
    $region33: #{tpu_custom_call.1} parent=1 // pred_fallthru
      _
    // Predicated region
    $region34: #{tpu_custom_call.1} parent=1 // pred_check
      _
    $region35: #{tpu_custom_call.1} parent=1 // pred_check_branch
      %230 = sbr.rel (0) target = $region37
    $region36: #{tpu_custom_call.1} parent=1 // pred_region
      %232 = dma.done [#allocation5], 256
    $region37: #{tpu_custom_call.1} parent=1 // pred_fallthru
      _
    %233 = vsyncpa [#allocation4], 1
    %234 = vsyncpa [#allocation7], 1
    %235 = vsyncpa [#allocation5], 1

</llo_original>
